<compile_context>
chip_gen: v5e
topology: v5e:2x2
jax: 0.10.0
libtpu: 0.0.40
codegen_flags: <defaults>
</compile_context>

<pallas_src>
import jax
import jax.numpy as jnp
from jax.experimental import pallas as pl
from jax.experimental.pallas import tpu as pltpu


def _funcgnn_probe_kernel(batch_ref, proj_ref, wdcu_ref, edges_ref,
                          ds_ref, cs_ref, us_ref):
    # batch_ref: (TB, S, H)   proj_ref: (H, R)   wdcu_ref: (3, R)
    # edges_ref: (S, 2*Nc)    ds_ref/us_ref: (TB, S)   cs_ref: (TB, 2*Nc)
    tb, s, h = batch_ref.shape
    r = proj_ref.shape[1]

    # transformed = batch @ proj  (MXU, f32 accumulation), done as a 2-D matmul.
    x2 = batch_ref[...].reshape(tb * s, h)                      # merge leading dims
    t2 = jnp.dot(x2, proj_ref[...], preferred_element_type=jnp.float32)   # (TB*S, R)
    t3 = t2.reshape(tb, s, r)                                   # (TB, S, R)

    # Per-token projections onto the d / c / u vectors: broadcast-mul + lane reduce.
    ds = jnp.sum(t3 * wdcu_ref[0, :], axis=-1)                  # (TB, S)
    cs_proj = jnp.sum(t3 * wdcu_ref[1, :], axis=-1)             # (TB, S)
    us = jnp.sum(t3 * wdcu_ref[2, :], axis=-1)                  # (TB, S)

    # Edge scores: (TB, S) @ (S, 2*Nc) -> lane-dense (TB, 128) output block.
    cs = jnp.dot(cs_proj, edges_ref[...], preferred_element_type=jnp.float32)

    ds_ref[...] = ds.astype(ds_ref.dtype)
    cs_ref[...] = cs.astype(cs_ref.dtype)
    us_ref[...] = us.astype(us_ref.dtype)


def _pick_block_b(B, S, H, itemsize):
    # Keep the double-buffered batch block comfortably inside scoped VMEM on
    # every generation (v5e default scoped limit 16 MiB, v7x physical 64 MiB):
    # ~4 MiB per batch buffer -> ~8 MiB double-buffered + tiny weights/outputs.
    per_row = max(S * H * itemsize, 1)
    tb = max(1, (4 * 1024 * 1024) // per_row)
    tb = min(tb, 1024, B)
    if tb < B:
        tb = max(8, (tb // 8) * 8)   # sublane-aligned blocks for the 2-D outputs
    return int(tb)


def funcgnn_parser_probe_forward(batch, proj, vectors_d, vectors_c,
                                 vectors_c_edges, vectors_u, *, block_b=None):
    """Pallas implementation of FuncGNNParserProbe.forward.

    Args:
      batch:           (B, S, H) float32, S must equal number_labels_d
      proj:            (H, R)
      vectors_d:       (R,)
      vectors_c:       (R, 1)
      vectors_c_edges: (S, 2*Nc)  with 2*Nc == 128 (torch .view(B, 64, 2))
      vectors_u:       (R,)
    Returns:
      (ds_pred, cs_pred, us_pred) with shapes (B, S), (B, 64, 2), (B, S).
    """
    B, S, H = batch.shape
    R = proj.shape[1]
    n_edge_out = vectors_c_edges.shape[1]          # 2 * number_labels_c (== 128)

    # Stack the three projection vectors into one resident (3, R) weight block.
    wdcu = jnp.stack([vectors_d, vectors_c[:, 0], vectors_u], axis=0)

    tb = block_b if block_b is not None else _pick_block_b(B, S, H, batch.dtype.itemsize)
    grid_b = pl.cdiv(B, tb)

    ds_pred, cs_flat, us_pred = pl.pallas_call(
        _funcgnn_probe_kernel,
        out_shape=(
            jax.ShapeDtypeStruct((B, S), batch.dtype),
            jax.ShapeDtypeStruct((B, n_edge_out), batch.dtype),
            jax.ShapeDtypeStruct((B, S), batch.dtype),
        ),
        grid_spec=pltpu.PrefetchScalarGridSpec(
            num_scalar_prefetch=0,
            grid=(grid_b,),
            in_specs=[
                pl.BlockSpec((tb, S, H), lambda i: (i, 0, 0)),      # batch tile
                pl.BlockSpec((H, R), lambda i: (0, 0)),             # proj (resident)
                pl.BlockSpec((3, R), lambda i: (0, 0)),             # d/c/u vectors
                pl.BlockSpec((S, n_edge_out), lambda i: (0, 0)),    # edge weights
            ],
            out_specs=(
                pl.BlockSpec((tb, S), lambda i: (i, 0)),
                pl.BlockSpec((tb, n_edge_out), lambda i: (i, 0)),
                pl.BlockSpec((tb, S), lambda i: (i, 0)),
            ),
        ),
        compiler_params=pltpu.CompilerParams(
            dimension_semantics=("parallel",),
            vmem_limit_bytes=32 * 1024 * 1024,
        ),
    )(batch, proj, wdcu, vectors_c_edges)

    # Same element order as torch's .view(cs_pred_proj.shape[0], 64, 2).
    cs_pred = cs_flat.reshape(B, 64, 2)
    return ds_pred, cs_pred, us_pred


if __name__ == "__main__":
    # Shapes implied by the forward:
    #   max_seq_len S == number_labels_d, and number_labels_c == 64 so that
    #   2*Nc == 128 matches the hard-coded .view(B, 64, 2).
    B, S = 2, 8
    hidden_dim, probe_rank = 32, 16
    n_d, n_c, n_u = S, 64, 8

    key = jax.random.PRNGKey(0)
    k_batch, k_proj, k_d, k_c, k_e, k_u = jax.random.split(key, 6)

    batch = jax.random.normal(k_batch, (B, S, hidden_dim), dtype=jnp.float32)
    proj = jax.random.uniform(k_proj, (hidden_dim, probe_rank),
                              minval=-0.05, maxval=0.05, dtype=jnp.float32)
    vectors_d = jax.random.uniform(k_d, (probe_rank,),
                                   minval=-0.05, maxval=0.05, dtype=jnp.float32)
    vectors_c = jax.random.uniform(k_c, (probe_rank, 1),
                                   minval=-0.05, maxval=0.05, dtype=jnp.float32)
    vectors_c_edges = jax.random.uniform(k_e, (n_d, n_c * 2),
                                         minval=-0.05, maxval=0.05, dtype=jnp.float32)
    vectors_u = jax.random.uniform(k_u, (probe_rank,),
                                   minval=-0.05, maxval=0.05, dtype=jnp.float32)

    ds_pred, cs_pred, us_pred = funcgnn_parser_probe_forward(
        batch, proj, vectors_d, vectors_c, vectors_c_edges, vectors_u)
    jax.block_until_ready((ds_pred, cs_pred, us_pred))

    # Plain-JAX reference with the same op order as the PyTorch forward.
    transformed = batch @ proj
    ds_ref = transformed @ vectors_d
    cs_proj_ref = jnp.squeeze(transformed @ vectors_c, axis=-1)
    cs_ref = (cs_proj_ref @ vectors_c_edges).reshape(B, 64, 2)
    us_ref = transformed @ vectors_u

    assert ds_pred.shape == (B, S)
    assert cs_pred.shape == (B, 64, 2)
    assert us_pred.shape == (B, S)
    assert jnp.allclose(ds_pred, ds_ref, atol=1e-5, rtol=1e-5)
    assert jnp.allclose(cs_pred, cs_ref, atol=1e-5, rtol=1e-5)
    assert jnp.allclose(us_pred, us_ref, atol=1e-5, rtol=1e-5)

    print("KERNEL_OK")
</pallas_src>

<mosaic_0001>
module attributes {stable_mosaic.version = 11 : i64} {
  func.func @_funcgnn_probe_kernel(%arg0: i32, %arg1: memref<2x8x32xf32, #tpu.memory_space<vmem>>, %arg2: memref<32x16xf32, #tpu.memory_space<vmem>>, %arg3: memref<3x16xf32, #tpu.memory_space<vmem>>, %arg4: memref<8x128xf32, #tpu.memory_space<vmem>>, %arg5: memref<2x8xf32, #tpu.memory_space<vmem>>, %arg6: memref<2x128xf32, #tpu.memory_space<vmem>>, %arg7: memref<2x8xf32, #tpu.memory_space<vmem>>) attributes {dimension_semantics = [#tpu.dimension_semantics<parallel>], iteration_bounds = array<i64: 1>, scalar_prefetch = 0 : i64, scratch_operands = 0 : i64, tpu.core_type = #tpu.core_type<tc>, window_params = [{transform_indices = @transform_0, window_bounds = array<i64: 2, 8, 32>}, {pipeline_mode = #tpu.pipeline_mode<synchronous>, transform_indices = @transform_1, window_bounds = array<i64: 32, 16>}, {pipeline_mode = #tpu.pipeline_mode<synchronous>, transform_indices = @transform_2, window_bounds = array<i64: 3, 16>}, {pipeline_mode = #tpu.pipeline_mode<synchronous>, transform_indices = @transform_3, window_bounds = array<i64: 8, 128>}, {transform_indices = @transform_4, window_bounds = array<i64: 2, 8>}, {transform_indices = @transform_5, window_bounds = array<i64: 2, 128>}, {transform_indices = @transform_6, window_bounds = array<i64: 2, 8>}]} {
    %c0 = arith.constant 0 : index
    %c0_0 = arith.constant 0 : index
    %c0_1 = arith.constant 0 : index
    %0 = vector.load %arg1[%c0, %c0_0, %c0_1] : memref<2x8x32xf32, #tpu.memory_space<vmem>>, vector<2x8x32xf32>
    %1 = vector.shape_cast %0 : vector<2x8x32xf32> to vector<16x32xf32>
    %c0_2 = arith.constant 0 : index
    %c0_3 = arith.constant 0 : index
    %2 = vector.load %arg2[%c0_2, %c0_3] : memref<32x16xf32, #tpu.memory_space<vmem>>, vector<32x16xf32>
    %cst = arith.constant dense<0.000000e+00> : vector<16x16xf32>
    %3 = tpu.matmul %1, %2, %cst {dimension_numbers = #tpu.dot_dimension_numbers<[1], [0], [0], [1], [0, 0, 1, 1], [], []>} : vector<16x32xf32>, vector<32x16xf32>, vector<16x16xf32> -> vector<16x16xf32>
    %4 = vector.shape_cast %3 : vector<16x16xf32> to vector<2x8x16xf32>
    %c0_4 = arith.constant 0 : index
    %c0_5 = arith.constant 0 : index
    %5 = vector.load %arg3[%c0_4, %c0_5] : memref<3x16xf32, #tpu.memory_space<vmem>>, vector<1x16xf32>
    %6 = vector.shape_cast %5 : vector<1x16xf32> to vector<16xf32>
    %7 = vector.shape_cast %6 : vector<16xf32> to vector<1x1x16xf32>
    %8 = vector.broadcast %7 : vector<1x1x16xf32> to vector<2x8x16xf32>
    %9 = arith.mulf %4, %8 : vector<2x8x16xf32>
    %cst_6 = arith.constant dense<0.000000e+00> : vector<2x8xf32>
    %10 = vector.multi_reduction <add>, %9, %cst_6 [2] : vector<2x8x16xf32> to vector<2x8xf32>
    %c1 = arith.constant 1 : index
    %c0_7 = arith.constant 0 : index
    %11 = vector.load %arg3[%c1, %c0_7] : memref<3x16xf32, #tpu.memory_space<vmem>>, vector<1x16xf32>
    %12 = vector.shape_cast %11 : vector<1x16xf32> to vector<16xf32>
    %13 = vector.shape_cast %12 : vector<16xf32> to vector<1x1x16xf32>
    %14 = vector.broadcast %13 : vector<1x1x16xf32> to vector<2x8x16xf32>
    %15 = arith.mulf %4, %14 : vector<2x8x16xf32>
    %cst_8 = arith.constant dense<0.000000e+00> : vector<2x8xf32>
    %16 = vector.multi_reduction <add>, %15, %cst_8 [2] : vector<2x8x16xf32> to vector<2x8xf32>
    %c2 = arith.constant 2 : index
    %c0_9 = arith.constant 0 : index
    %17 = vector.load %arg3[%c2, %c0_9] : memref<3x16xf32, #tpu.memory_space<vmem>>, vector<1x16xf32>
    %18 = vector.shape_cast %17 : vector<1x16xf32> to vector<16xf32>
    %19 = vector.shape_cast %18 : vector<16xf32> to vector<1x1x16xf32>
    %20 = vector.broadcast %19 : vector<1x1x16xf32> to vector<2x8x16xf32>
    %21 = arith.mulf %4, %20 : vector<2x8x16xf32>
    %cst_10 = arith.constant dense<0.000000e+00> : vector<2x8xf32>
    %22 = vector.multi_reduction <add>, %21, %cst_10 [2] : vector<2x8x16xf32> to vector<2x8xf32>
    %c0_11 = arith.constant 0 : index
    %c0_12 = arith.constant 0 : index
    %23 = vector.load %arg4[%c0_11, %c0_12] : memref<8x128xf32, #tpu.memory_space<vmem>>, vector<8x128xf32>
    %cst_13 = arith.constant dense<0.000000e+00> : vector<2x128xf32>
    %24 = tpu.matmul %16, %23, %cst_13 {dimension_numbers = #tpu.dot_dimension_numbers<[1], [0], [0], [1], [0, 0, 1, 1], [], []>} : vector<2x8xf32>, vector<8x128xf32>, vector<2x128xf32> -> vector<2x128xf32>
    %c0_14 = arith.constant 0 : index
    %c0_15 = arith.constant 0 : index
    %25 = vector.load %arg5[%c0_14, %c0_15] : memref<2x8xf32, #tpu.memory_space<vmem>>, vector<2x8xf32>
    tpu.vector_store %arg5[%c0_14, %c0_15], %10 {strides = array<i32>} : memref<2x8xf32, #tpu.memory_space<vmem>>, vector<2x8xf32>,
    %c0_16 = arith.constant 0 : index
    %c0_17 = arith.constant 0 : index
    %26 = vector.load %arg6[%c0_16, %c0_17] : memref<2x128xf32, #tpu.memory_space<vmem>>, vector<2x128xf32>
    tpu.vector_store %arg6[%c0_16, %c0_17], %24 {strides = array<i32>} : memref<2x128xf32, #tpu.memory_space<vmem>>, vector<2x128xf32>,
    %c0_18 = arith.constant 0 : index
    %c0_19 = arith.constant 0 : index
    %27 = vector.load %arg7[%c0_18, %c0_19] : memref<2x8xf32, #tpu.memory_space<vmem>>, vector<2x8xf32>
    tpu.vector_store %arg7[%c0_18, %c0_19], %22 {strides = array<i32>} : memref<2x8xf32, #tpu.memory_space<vmem>>, vector<2x8xf32>,
    return
  }
  func.func @transform_0(%arg0: i32) -> (i32, i32, i32) {
    %c0_i32 = arith.constant 0 : i32
    %c0_i32_0 = arith.constant 0 : i32
    %c0_i32_1 = arith.constant 0 : i32
    return %arg0, %c0_i32, %c0_i32_0 : i32, i32, i32
  }
  func.func @transform_1(%arg0: i32) -> (i32, i32) {
    %c0_i32 = arith.constant 0 : i32
    %c0_i32_0 = arith.constant 0 : i32
    %c0_i32_1 = arith.constant 0 : i32
    return %c0_i32, %c0_i32_0 : i32, i32
  }
  func.func @transform_2(%arg0: i32) -> (i32, i32) {
    %c0_i32 = arith.constant 0 : i32
    %c0_i32_0 = arith.constant 0 : i32
    %c0_i32_1 = arith.constant 0 : i32
    return %c0_i32, %c0_i32_0 : i32, i32
  }
  func.func @transform_3(%arg0: i32) -> (i32, i32) {
    %c0_i32 = arith.constant 0 : i32
    %c0_i32_0 = arith.constant 0 : i32
    %c0_i32_1 = arith.constant 0 : i32
    return %c0_i32, %c0_i32_0 : i32, i32
  }
  func.func @transform_4(%arg0: i32) -> (i32, i32) {
    %c0_i32 = arith.constant 0 : i32
    %c0_i32_0 = arith.constant 0 : i32
    return %arg0, %c0_i32 : i32, i32
  }
  func.func @transform_5(%arg0: i32) -> (i32, i32) {
    %c0_i32 = arith.constant 0 : i32
    %c0_i32_0 = arith.constant 0 : i32
    return %arg0, %c0_i32 : i32, i32
  }
  func.func @transform_6(%arg0: i32) -> (i32, i32) {
    %c0_i32 = arith.constant 0 : i32
    %c0_i32_0 = arith.constant 0 : i32
    return %arg0, %c0_i32 : i32, i32
  }
}

</mosaic_0001>

<llo_original>
// kernel: tpu_custom_call.1
$region0: #{tpu_custom_call.1}
  #allocation0 [shape = 'u32[]', space=smem, size = 0x4, offset = 0x4, fixed_abs, tag = 'smem constant byte address 0x4 - core index']
  #allocation1 [shape = 'u32[72,128]{1,0:T(1,128)}', space=vmem, size = 0x9000, scoped, tag = 'internal scratch']
  %s0 = inlined_call_operand.vmem [shape: f32[2,8,32], index: 0, kind: input, shape index: {}]
  %s1 = inlined_call_operand.vmem [shape: f32[32,16], index: 1, kind: input, shape index: {}]
  %s2 = inlined_call_operand.vmem [shape: f32[3,16], index: 2, kind: input, shape index: {}]
  %s3 = inlined_call_operand.vmem [shape: f32[8,128], index: 3, kind: input, shape index: {}]
  %s4 = inlined_call_operand.hbm [shape: f32[2,8], index: 4, kind: output, shape index: {0}]
  %s5 = inlined_call_operand.hbm [shape: f32[2,128], index: 5, kind: output, shape index: {1}]
  %s6 = inlined_call_operand.hbm [shape: f32[2,8], index: 6, kind: output, shape index: {2}]
  %7 = xla_tuple %s4, %s5, %s6
  %s8 = sld [smem:[#allocation0]]
  $region42: #{tpu_custom_call.1} parent=0
    _
  %s10 = ssub.s32 1, %s8
  %s11 = scalar_select 0, %s10, %s8
  $region1: #{tpu_custom_call.1} parent=0
    #allocation2 [shape = 'u8[1024]{0}', space=vmem, size = 0x400, scoped, tag = 'output window, operand 0, single buffered']
    #allocation3 [shape = 's32[1]{0}', space=sflag, size = 0x4, scoped, tag = 'scoped memory for tpu_custom_call.1']
    #allocation4 [shape = 'u8[1024]{0}', space=vmem, size = 0x400, scoped, tag = 'output window, operand 1, single buffered']
    #allocation5 [shape = 's32[1]{0}', space=sflag, size = 0x4, scoped, tag = 'scoped memory for tpu_custom_call.1']
    #allocation6 [shape = 'u8[1024]{0}', space=vmem, size = 0x400, scoped, tag = 'output window, operand 2, single buffered']
    %12 = vsyncpa [#allocation3], 0
    %13 = vsyncpa [#allocation5], 0
    // Predicated region
    $region2: #{tpu_custom_call.1} parent=1 // pred_check
      _
    $region3: #{tpu_custom_call.1} parent=1 // pred_check_branch
      %15 = sbr.rel (0) target = $region5
    $region4: #{tpu_custom_call.1} parent=1 // pred_region
      _
    $region5: #{tpu_custom_call.1} parent=1 // pred_fallthru
      _
    // Predicated region
    $region6: #{tpu_custom_call.1} parent=1 // pred_check
      _
    $region7: #{tpu_custom_call.1} parent=1 // pred_check_branch
      %17 = sbr.rel (0) target = $region9
    $region8: #{tpu_custom_call.1} parent=1 // pred_region
      _
    $region9: #{tpu_custom_call.1} parent=1 // pred_fallthru
      _
    // Predicated region
    $region10: #{tpu_custom_call.1} parent=1 // pred_check
      _
    $region11: #{tpu_custom_call.1} parent=1 // pred_check_branch
      %19 = sbr.rel (0) target = $region13
    $region12: #{tpu_custom_call.1} parent=1 // pred_region
      _
    $region13: #{tpu_custom_call.1} parent=1 // pred_fallthru
      _
    // Predicated region
    $region14: #{tpu_custom_call.1} parent=1 // pred_check
      _
    $region15: #{tpu_custom_call.1} parent=1 // pred_check_branch
      %21 = sbr.rel (0) target = $region17
    $region16: #{tpu_custom_call.1} parent=1 // pred_region
      _
    $region17: #{tpu_custom_call.1} parent=1 // pred_fallthru
      _
    %v22 = vld [vmem:[%s0] sm:$0xff]
    %v23 = vld [vmem:[%s0 + $0x8] sm:$0xff]
    %v24 = vld [vmem:[%s1] sm:$0xff]
    %v25 = vld [vmem:[%s1 + $0x8] sm:$0xff]
    %v26 = vld [vmem:[%s1 + $0x10] sm:$0xff]
    %v27 = vld [vmem:[%s1 + $0x18] sm:$0xff]
    %vm28 = vcmask 261120
    %v30 = vsel %vm28, %v22, 0
    %v33 = vsel %vm28, %v23, 0
    %35 = vmatpush.msra.mxu0 0.0
    %36 = vmatpush.msra.mxu0 0.0
    %37 = vmatpush.msra.mxu0 0.0
    %38 = vmatpush.msra.mxu0 0.0
    %39 = vmatpush.msra.mxu0 0.0
    %40 = vmatpush.msra.mxu0 0.0
    %41 = vmatpush.msra.mxu0 0.0
    %42 = vmatpush.msra.mxu0 0.0
    %43 = vmatpush.msra.mxu0 0.0
    %44 = vmatpush.msra.mxu0 0.0
    %45 = vmatpush.msra.mxu0 0.0
    %46 = vmatpush.msra.mxu0 0.0
    %47 = vmatpush.msra.mxu0 %v27
    %48 = vmatpush.msra.mxu0 %v26
    %49 = vmatpush.msra.mxu0 %v25
    %50 = vmatpush.msra.mxu0 %v24
    %51 = vmatmul.f32.gmra.mxu0 %v30
    %v52 = vpop.f32.mrf.mxu0
    %v53 = vadd.f32 0.0, %v52
    %54 = vmatmul.f32.gmra.mxu0 %v33
    %v55 = vpop.f32.mrf.mxu0
    %v56 = vadd.f32 0.0, %v55
    %57 = vdwg.mxu0
    %v58 = vld [vmem:[%s2] sm:$0x1]
    %v59 = vperm.slane %v58, 0
    %v60 = vmul.f32 %v53, %v59
    %v61 = vmul.f32 %v56, %v59
    %vm62 = vcmask 130048
    %v63 = vsel %vm62, %v60, 0.0
    %64 = vadd.xlane.f32.xlu0 %v63
    %v65 = vpop.xlane.xlu0 %64
    %v66 = vsel %vm62, %v61, 0.0
    %67 = vadd.xlane.f32.xlu0 %v66
    %v68 = vpop.xlane.xlu0 %67
    %v69 = vld [vmem:[%s2 + $0x1] sm:$0x1]
    %v70 = vperm.slane %v69, 0
    %v71 = vmul.f32 %v53, %v70
    %v72 = vmul.f32 %v56, %v70
    %v73 = vsel %vm62, %v71, 0.0
    %74 = vadd.xlane.f32.xlu0 %v73
    %v75 = vpop.xlane.xlu0 %74
    %v76 = vsel %vm62, %v72, 0.0
    %77 = vadd.xlane.f32.xlu0 %v76
    %v78 = vpop.xlane.xlu0 %77
    %v79 = vld [vmem:[%s2 + $0x2] sm:$0x1]
    %v80 = vperm.slane %v79, 0
    %v81 = vmul.f32 %v53, %v80
    %v82 = vmul.f32 %v56, %v80
    %v83 = vsel %vm62, %v81, 0.0
    %84 = vadd.xlane.f32.xlu0 %v83
    %v85 = vpop.xlane.xlu0 %84
    %v86 = vsel %vm62, %v82, 0.0
    %87 = vadd.xlane.f32.xlu0 %v86
    %v88 = vpop.xlane.xlu0 %87
    %v89 = vld [vmem:[%s3] sm:$0xff]
    %v92 = vlaneseq
    %v93 = vand.u32 %v92, 127
    %v94 = vperm.slane %v75, %v93
    %v95 = vperm.slane %v78, %v93
    %vm96 = vcmask 1041409
    %v97 = vsel %vm96, %v95, %v94
    %vm98 = vcmask 64512
    %v99 = vsel %vm98, %v97, 0
    %101 = vmatpush.msra.mxu0 0.0
    %102 = vmatpush.msra.mxu0 0.0
    %103 = vmatpush.msra.mxu0 0.0
    %104 = vmatpush.msra.mxu0 0.0
    %105 = vmatpush.msra.mxu0 0.0
    %106 = vmatpush.msra.mxu0 0.0
    %107 = vmatpush.msra.mxu0 0.0
    %108 = vmatpush.msra.mxu0 0.0
    %109 = vmatpush.msra.mxu0 0.0
    %110 = vmatpush.msra.mxu0 0.0
    %111 = vmatpush.msra.mxu0 0.0
    %112 = vmatpush.msra.mxu0 0.0
    %113 = vmatpush.msra.mxu0 0.0
    %114 = vmatpush.msra.mxu0 0.0
    %115 = vmatpush.msra.mxu0 0.0
    %116 = vmatpush.msra.mxu0 %v89
    %117 = vmatmul.f32.gmra.mxu0 %v99
    %v118 = vpop.f32.mrf.mxu0
    %v119 = vadd.f32 0.0, %v118
    %120 = vdwg.mxu0
    %v123 = vperm.slane %v65, %v93
    %v124 = vperm.slane %v68, %v93
    %v125 = vsel %vm96, %v124, %v123
    %vm127 = vcmask 58368
    %128 = vst.msk [vmem:[#allocation2] sm:$0x3] %vm127, %v125
    %129 = vst [vmem:[#allocation4] sm:$0x3] %v119
    %v132 = vperm.slane %v85, %v93
    %v133 = vperm.slane %v88, %v93
    %v134 = vsel %vm96, %v133, %v132
    %136 = vst.msk [vmem:[#allocation6] sm:$0x3] %vm127, %v134
    // Predicated region
    $region18: #{tpu_custom_call.1} parent=1 // pred_check
      _
    $region19: #{tpu_custom_call.1} parent=1 // pred_check_branch
      %138 = sbr.rel (0) target = $region21
    $region20: #{tpu_custom_call.1} parent=1 // pred_region
      %140 = vsyncadd [#allocation3], 0
      %s142 = sshll.u32 [#allocation2], 4
      %s143 = int_to_ptr.vmem [resolvable:$true] %s142
      %s144 = sshll.u32 %s4, 4
      %s145 = int_to_ptr.hbm [resolvable:$true] %s144
      %147 = dma.vmem_to_hbm [thread:$0]  %s143, 32, %s145, [#allocation3]
    $region21: #{tpu_custom_call.1} parent=1 // pred_fallthru
      _
    // Predicated region
    $region22: #{tpu_custom_call.1} parent=1 // pred_check
      _
    $region23: #{tpu_custom_call.1} parent=1 // pred_check_branch
      %149 = sbr.rel (0) target = $region25
    $region24: #{tpu_custom_call.1} parent=1 // pred_region
      %151 = vsyncadd [#allocation5], 0
      %s153 = sshll.u32 [#allocation4], 4
      %s154 = int_to_ptr.vmem [resolvable:$true] %s153
      %s155 = sshll.u32 %s5, 4
      %s156 = int_to_ptr.hbm [resolvable:$true] %s155
      %158 = dma.vmem_to_hbm [thread:$0]  %s154, 32, %s156, [#allocation5]
    $region25: #{tpu_custom_call.1} parent=1 // pred_fallthru
      _
    // Predicated region
    $region26: #{tpu_custom_call.1} parent=1 // pred_check
      _
    $region27: #{tpu_custom_call.1} parent=1 // pred_check_branch
      %160 = sbr.rel (0) target = $region29
    $region28: #{tpu_custom_call.1} parent=1 // pred_region
      %162 = vsyncadd [#allocation5], 0
      %s164 = sshll.u32 [#allocation6], 4
      %s165 = int_to_ptr.vmem [resolvable:$true] %s164
      %s166 = sshll.u32 %s6, 4
      %s167 = int_to_ptr.hbm [resolvable:$true] %s166
      %169 = dma.vmem_to_hbm [thread:$0]  %s165, 32, %s167, [#allocation5]
    $region29: #{tpu_custom_call.1} parent=1 // pred_fallthru
      _
    // Predicated region
    $region30: #{tpu_custom_call.1} parent=1 // pred_check
      _
    $region31: #{tpu_custom_call.1} parent=1 // pred_check_branch
      %171 = sbr.rel (0) target = $region33
    $region32: #{tpu_custom_call.1} parent=1 // pred_region
      %173 = dma.done [#allocation3], 32
    $region33: #{tpu_custom_call.1} parent=1 // pred_fallthru
      _
    // Predicated region
    $region34: #{tpu_custom_call.1} parent=1 // pred_check
      _
    $region35: #{tpu_custom_call.1} parent=1 // pred_check_branch
      %175 = sbr.rel (0) target = $region37
    $region36: #{tpu_custom_call.1} parent=1 // pred_region
      %177 = dma.done [#allocation5], 32
    $region37: #{tpu_custom_call.1} parent=1 // pred_fallthru
      _
    // Predicated region
    $region38: #{tpu_custom_call.1} parent=1 // pred_check
      _
    $region39: #{tpu_custom_call.1} parent=1 // pred_check_branch
      %179 = sbr.rel (0) target = $region41
    $region40: #{tpu_custom_call.1} parent=1 // pred_region
      %181 = dma.done [#allocation5], 32
    $region41: #{tpu_custom_call.1} parent=1 // pred_fallthru
      _
    %182 = vsyncpa [#allocation3], 1
    %183 = vsyncpa [#allocation5], 1

</llo_original>
